<compile_context>
chip_gen: v7x
topology: tpu7x:2x2x1
jax: 0.10.0
libtpu: 0.0.40
codegen_flags: <defaults>
</compile_context>

<pallas_src>
import functools
import numpy as np
import jax
import jax.numpy as jnp
from jax.experimental import pallas as pl
from jax.experimental.pallas import tpu as pltpu

# Tile caps (multiples of 8 / 128). Footprints stay a few MiB so the same
# tiling fits v5e/v6e (128 MiB VMEM) and v7x (64 MiB/TC).
_CAP_M, _CAP_N = 512, 512
_CAP_K = 512                 # K tile on the (rare) K-split fallback path
_FULL_K_MAX = 2048           # keep W fully K-resident when K_pad <= this
_CAP_U, _CAP_E, _CAP_D = 512, 512, 512


# --------------------------------------------------------------------------- #
# small helpers
# --------------------------------------------------------------------------- #
def _round_up(x, m):
    return ((x + m - 1) // m) * m


def _pick_tile(dim, base, cap):
    """Tile size (multiple of `base`, <= cap) and the padded dim it divides."""
    t = min(cap, _round_up(dim, base))
    return t, _round_up(dim, t)


def _pad2d(a, rows, cols, fill=0):
    r, c = a.shape
    if r == rows and c == cols:
        return a
    return jnp.pad(a, ((0, rows - r), (0, cols - c)), constant_values=fill)


def _halve_tile(t, pad, base):
    """Smaller tile (multiple of `base`, dividing `pad`) to get a >=2-way grid
    split (v7x has 2 TensorCores). Returns t unchanged if none exists."""
    start = (pad // 2) // base * base
    for cand in range(start, 0, -base):
        if pad % cand == 0:
            return cand
    return t


def _vmem_limit(tile_bytes):
    """Double-buffered tile footprint + headroom, capped well inside v7x's
    64 MiB/TC physical VMEM."""
    return int(min(max(2 * tile_bytes + (4 << 20), 8 << 20), 32 << 20))


def _compose(x, r, mode):
    if mode == "add":
        return x + r
    if mode == "sub":
        return x - r
    if mode == "mult":
        return x * r
    raise ValueError(f"unknown composition mode: {mode}")


# --------------------------------------------------------------------------- #
# Kernel 1: fused composition + matmul   out = (x <mode> r) @ W
# --------------------------------------------------------------------------- #
def _comp_matmul_fullk_kernel(mode, has_r, *refs):
    # Full-K-resident path: one MXU dot per (i, j) tile; no reduction axis,
    # no accumulator scratch.
    if has_r:
        x_ref, r_ref, w_ref, o_ref = refs
    else:
        x_ref, w_ref, o_ref = refs
    x = x_ref[...].astype(jnp.float32)                       # compose in f32 (v5e-friendly)
    c = _compose(x, r_ref[...].astype(jnp.float32), mode) if has_r else x
    o_ref[...] = jnp.dot(c.astype(jnp.bfloat16), w_ref[...],
                         preferred_element_type=jnp.float32).astype(o_ref.dtype)


def _comp_matmul_ksplit_kernel(mode, has_r, *refs):
    # Fallback for very large K: reduce over the k grid axis, accumulating
    # directly into the resident f32 output tile (no scratch).
    if has_r:
        x_ref, r_ref, w_ref, o_ref = refs
    else:
        x_ref, w_ref, o_ref = refs

    @pl.when(pl.program_id(2) == 0)
    def _():
        o_ref[...] = jnp.zeros_like(o_ref)

    x = x_ref[...].astype(jnp.float32)
    c = _compose(x, r_ref[...].astype(jnp.float32), mode) if has_r else x
    o_ref[...] += jnp.dot(c.astype(jnp.bfloat16), w_ref[...],
                          preferred_element_type=jnp.float32)


def comp_linear(x, r, w, mode="add", out_dtype=jnp.float32, keep_padded=False):
    """(x <mode> r) @ w. r is None (plain linear), a (1, K) broadcast row, or a
    per-row (M, K) array. Activations streamed bf16, f32 compose/accumulate.
    out_dtype=bf16 + keep_padded=True lets the message path feed segment_sum
    with no extra slice / pad / cast HBM pass."""
    M, K = x.shape
    Kw, N = w.shape
    assert K == Kw

    tm, M_pad = _pick_tile(M, 8, _CAP_M)
    tn, N_pad = _pick_tile(N, 128, _CAP_N)

    full_k = _round_up(K, 128) <= _FULL_K_MAX
    if full_k:
        tk = K_pad = _round_up(K, 128)
    else:
        tk, K_pad = _pick_tile(K, 128, _CAP_K)

    # v7x: make sure the parallel (i, j) grid has >= 2 steps for small matrices.
    if (M_pad // tm) * (N_pad // tn) < 2:
        tn = _halve_tile(tn, N_pad, 128)
    if (M_pad // tm) * (N_pad // tn) < 2:
        tm = _halve_tile(tm, M_pad, 8)

    x_p = _pad2d(jnp.asarray(x), M_pad, K_pad).astype(jnp.bfloat16)
    w_p = _pad2d(jnp.asarray(w), K_pad, N_pad).astype(jnp.bfloat16)

    has_r = r is not None
    r_broadcast = False
    r_p = None
    if has_r:
        r = jnp.asarray(r)
        r_broadcast = (r.shape[0] == 1)
        r_p = _pad2d(r, 1 if r_broadcast else M_pad, K_pad).astype(jnp.bfloat16)

    if full_k:
        in_specs = [pl.BlockSpec((tm, K_pad), lambda i, j: (i, 0))]
        args = [x_p]
        if has_r:
            if r_broadcast:
                in_specs.append(pl.BlockSpec((1, K_pad), lambda i, j: (0, 0)))
            else:
                in_specs.append(pl.BlockSpec((tm, K_pad), lambda i, j: (i, 0)))
            args.append(r_p)
        in_specs.append(pl.BlockSpec((K_pad, tn), lambda i, j: (0, j)))
        args.append(w_p)
        grid = (M_pad // tm, N_pad // tn)
        out_specs = pl.BlockSpec((tm, tn), lambda i, j: (i, j))
        kernel = functools.partial(_comp_matmul_fullk_kernel, mode, has_r)
        dims = ("parallel", "parallel")
        call_out_dtype = out_dtype
        tile_bytes = (tm * K_pad * 2 + K_pad * tn * 2
                      + ((1 if r_broadcast else tm) * K_pad * 2 if has_r else 0)
                      + tm * tn * np.dtype(call_out_dtype).itemsize)
    else:
        in_specs = [pl.BlockSpec((tm, tk), lambda i, j, k: (i, k))]
        args = [x_p]
        if has_r:
            if r_broadcast:
                in_specs.append(pl.BlockSpec((1, tk), lambda i, j, k: (0, k)))
            else:
                in_specs.append(pl.BlockSpec((tm, tk), lambda i, j, k: (i, k)))
            args.append(r_p)
        in_specs.append(pl.BlockSpec((tk, tn), lambda i, j, k: (k, j)))
        args.append(w_p)
        grid = (M_pad // tm, N_pad // tn, K_pad // tk)
        out_specs = pl.BlockSpec((tm, tn), lambda i, j, k: (i, j))
        kernel = functools.partial(_comp_matmul_ksplit_kernel, mode, has_r)
        dims = ("parallel", "parallel", "arbitrary")
        call_out_dtype = jnp.float32      # accumulate into o_ref in f32
        tile_bytes = (tm * tk * 2 + tk * tn * 2
                      + ((1 if r_broadcast else tm) * tk * 2 if has_r else 0)
                      + tm * tn * 4)

    r_bytes = int(r_p.size) * 2 if has_r else 0
    cost = pl.CostEstimate(
        flops=2 * M_pad * K_pad * N_pad,
        transcendentals=0,
        bytes_accessed=int(x_p.size) * 2 + int(w_p.size) * 2 + r_bytes
                       + M_pad * N_pad * int(np.dtype(call_out_dtype).itemsize),
    )

    out = pl.pallas_call(
        kernel,
        out_shape=jax.ShapeDtypeStruct((M_pad, N_pad), call_out_dtype),
        grid=grid,
        in_specs=in_specs,
        out_specs=out_specs,
        compiler_params=pltpu.CompilerParams(
            dimension_semantics=dims,
            vmem_limit_bytes=_vmem_limit(tile_bytes)),
        cost_estimate=cost,
    )(*args)

    if out.dtype != out_dtype:
        out = out.astype(out_dtype)       # only hit on the K-split fallback
    if keep_padded:
        return out
    return out[:M, :N]


def linear(x, w):
    return comp_linear(x, None, w, mode="add")


# --------------------------------------------------------------------------- #
# Kernel 2: segment sum (scatter_add_) as a one-hot matmul, tiled over edges
# --------------------------------------------------------------------------- #
def _segment_sum_kernel(tu, ids_ref, msg_ref, o_ref):
    e = pl.program_id(2)

    @pl.when(e == 0)
    def _():
        o_ref[...] = jnp.zeros_like(o_ref)

    te = ids_ref.shape[1]
    u0 = pl.program_id(0) * tu                                   # row offset of this U tile
    row_ids = jax.lax.broadcasted_iota(jnp.int32, (tu, te), 0) + u0
    onehot = (ids_ref[...] == row_ids).astype(jnp.bfloat16)      # padded ids are -1 -> 0
    o_ref[...] += jnp.dot(onehot, msg_ref[...], preferred_element_type=jnp.float32)


def segment_sum(seg_ids, msg, num_segments):
    """Per-segment sum of msg rows (== torch scatter_add_ aggregation).
    Accepts msg already bf16 / column-padded (no extra cast or pad pass)."""
    E, D = msg.shape
    tu, U_pad = _pick_tile(num_segments, 8, _CAP_U)
    te, E_pad = _pick_tile(E, 128, _CAP_E)
    td, D_pad = _pick_tile(D, 128, _CAP_D)

    # v7x: >= 2 parallel steps when possible.
    if (U_pad // tu) * (D_pad // td) < 2:
        td = _halve_tile(td, D_pad, 128)
    if (U_pad // tu) * (D_pad // td) < 2:
        tu = _halve_tile(tu, U_pad, 8)

    ids_p = _pad2d(jnp.asarray(seg_ids, jnp.int32).reshape(1, E), 1, E_pad, fill=-1)
    msg_p = _pad2d(jnp.asarray(msg), E_pad, D_pad)
    if msg_p.dtype != jnp.bfloat16:
        msg_p = msg_p.astype(jnp.bfloat16)

    grid = (U_pad // tu, D_pad // td, E_pad // te)
    tile_bytes = te * 4 + te * td * 2 + tu * td * 4

    out = pl.pallas_call(
        functools.partial(_segment_sum_kernel, tu),
        out_shape=jax.ShapeDtypeStruct((U_pad, D_pad), jnp.float32),
        grid=grid,
        in_specs=[
            pl.BlockSpec((1, te), lambda u, d, e: (0, e)),
            pl.BlockSpec((te, td), lambda u, d, e: (e, d)),
        ],
        out_specs=pl.BlockSpec((tu, td), lambda u, d, e: (u, d)),
        compiler_params=pltpu.CompilerParams(
            dimension_semantics=("parallel", "parallel", "arbitrary"),
            vmem_limit_bytes=_vmem_limit(tile_bytes)),
    )(ids_p, msg_p)
    return out[:num_segments, :D]


# --------------------------------------------------------------------------- #
# CompGCNLayer forward (Pallas kernels + host-side index glue)
# --------------------------------------------------------------------------- #
def init_params(key, input_dim, output_dim):
    ks = jax.random.split(key, 4)
    bound = 1.0 / np.sqrt(input_dim)

    def w(k):  # stored as [Din, Dout] (== torch weight.T)
        return jax.random.uniform(k, (input_dim, output_dim), jnp.float32, -bound, bound)

    return {"W_o": w(ks[0]), "W_i": w(ks[1]), "W_s": w(ks[2]), "W_r": w(ks[3])}


def compgcn_forward(params, node_embed, rela_embed, edges, num_rela, mode="add"):
    edges_np = np.asarray(edges)
    N_nodes = node_embed.shape[0]
    Dout = params["W_i"].shape[1]

    # h_v = W_i(comp(node_embed, rela_embed[2*num_rela], mode)) — kept padded
    # (rows & cols) until the final return so scatter-adds stay lane-dense.
    self_rel = rela_embed[num_rela * 2][None, :]                     # (1, Din) broadcast row
    h_v = comp_linear(node_embed, self_rel, params["W_i"], mode, keep_padded=True)

    # persists across both edge blocks, mirroring the torch implementation
    index_matrix = np.zeros(N_nodes, dtype=np.int64)

    def edge_block(h_v_pad, mask, W):
        sel = edges_np[mask]
        if sel.shape[0] == 0:                                        # empty edge class guard
            return h_v_pad
        src, rela, des = sel[:, 0], sel[:, 1], sel[:, 2]
        # torch: index_matrix[des] = arange(len(des))  (last write wins on dups)
        index_matrix[des] = np.arange(des.shape[0], dtype=np.int64)
        # TODO(synk): pull node_embed[src] / rela_embed[rela] gathers into the
        #             kernel via PrefetchScalarGridSpec + pl.Element row specs.
        # torch calls composition() with its default mode ('add') for messages.
        # Message emitted bf16 + padded: feeds segment_sum with no re-pad/cast.
        msg = comp_linear(node_embed[src], rela_embed[rela], W, "add",
                          out_dtype=jnp.bfloat16, keep_padded=True)
        msg = msg[jnp.asarray(index_matrix[des])]                     # torch quirk: reuse last edge's msg
        des_unique, des_index = np.unique(des, return_inverse=True)   # torch.unique(return_inverse=True)
        agg = segment_sum(des_index, msg, int(des_unique.shape[0]))   # scatter_add_ in Pallas
        # TODO(synk): fuse this scatter-add into segment_sum via input_output_aliases.
        return h_v_pad.at[jnp.asarray(des_unique)].add(agg[:, :h_v_pad.shape[1]])

    h_v = edge_block(h_v, edges_np[:, 1] < num_rela, params["W_o"])
    h_v = edge_block(h_v, edges_np[:, 1] >= num_rela, params["W_s"])

    h_r = linear(rela_embed, params["W_r"])
    return h_v[:N_nodes, :Dout], h_r


# --------------------------------------------------------------------------- #
# Pure numpy/f32 reference (mirrors the PyTorch forward exactly) for validation
# --------------------------------------------------------------------------- #
def reference_forward(params, node_embed, rela_embed, edges, num_rela, mode="add"):
    W_o, W_i, W_s, W_r = (np.asarray(params[k]) for k in ("W_o", "W_i", "W_s", "W_r"))
    node = np.asarray(node_embed)
    rel = np.asarray(rela_embed)
    edges = np.asarray(edges)

    def comp(a, b, m="add"):
        return a + b if m == "add" else (a - b if m == "sub" else a * b)

    h_v = comp(node, rel[num_rela * 2][None, :], mode) @ W_i
    index_matrix = np.zeros(node.shape[0], dtype=np.int64)

    def block(h_v, mask, W):
        sel = edges[mask]
        if sel.shape[0] == 0:
            return h_v
        src, rela, des = sel[:, 0], sel[:, 1], sel[:, 2]
        index_matrix[des] = np.arange(des.shape[0], dtype=np.int64)
        msg = comp(node[src], rel[rela]) @ W
        msg = msg[index_matrix[des]]
        uu, inv = np.unique(des, return_inverse=True)
        agg = np.zeros((uu.shape[0], msg.shape[1]), np.float32)
        np.add.at(agg, inv, msg.astype(np.float32))
        out = h_v.copy()
        out[uu] += agg
        return out

    h_v = block(h_v, edges[:, 1] < num_rela, W_o)
    h_v = block(h_v, edges[:, 1] >= num_rela, W_s)
    h_r = rel @ W_r
    return h_v, h_r


# --------------------------------------------------------------------------- #
if __name__ == "__main__":
    key = jax.random.PRNGKey(0)
    # Din=1024 exercises the full-K-resident path (K_pad=1024 <= 2048); Dout=256
    # keeps outputs lane-dense (multiple of 128); shapes are still tiny overall.
    N, Din, Dout, num_rela, E_fwd = 24, 1024, 256, 3, 20

    k_node, k_rel, k_src, k_des, k_rela, k_params = jax.random.split(key, 6)
    node_embed = jax.random.normal(k_node, (N, Din), jnp.float32)
    rela_embed = jax.random.normal(k_rel, (2 * num_rela + 1, Din), jnp.float32)

    src = jax.random.randint(k_src, (E_fwd,), 0, N)
    des = jax.random.randint(k_des, (E_fwd,), 0, N)
    rela = jax.random.randint(k_rela, (E_fwd,), 0, num_rela)
    fwd_edges = jnp.stack([src, rela, des], axis=1)
    rev_edges = jnp.stack([des, rela + num_rela, src], axis=1)  # reversed edges, rela >= num_rela
    edges = np.asarray(jnp.concatenate([fwd_edges, rev_edges], axis=0), dtype=np.int64)

    params = init_params(k_params, Din, Dout)

    h_v, h_r = compgcn_forward(params, node_embed, rela_embed, edges, num_rela, mode="add")
    h_v = jax.block_until_ready(h_v)
    h_r = jax.block_until_ready(h_r)

    ref_h_v, ref_h_r = reference_forward(params, node_embed, rela_embed, edges, num_rela, mode="add")
    # bf16-streamed activations + bf16 MXU operands with f32 accumulation vs an
    # all-f32 numpy reference: expected relative error ~1e-3–1e-2.
    np.testing.assert_allclose(np.asarray(h_v), ref_h_v, rtol=4e-2, atol=4e-2)
    np.testing.assert_allclose(np.asarray(h_r), ref_h_r, rtol=4e-2, atol=4e-2)

    print("KERNEL_OK")
</pallas_src>

<mosaic_0001>
module attributes {stable_mosaic.version = 11 : i64} {
  func.func @_comp_matmul_fullk_kernel(%arg0: i32, %arg1: i32, %arg2: memref<24x1024xbf16, #tpu.memory_space<vmem>>, %arg3: memref<1x1024xbf16, #tpu.memory_space<vmem>>, %arg4: memref<1024x128xbf16, #tpu.memory_space<vmem>>, %arg5: memref<24x128xf32, #tpu.memory_space<vmem>>) attributes {dimension_semantics = [#tpu.dimension_semantics<parallel>, #tpu.dimension_semantics<parallel>], iteration_bounds = array<i64: 1, 2>, scalar_prefetch = 0 : i64, scratch_operands = 0 : i64, tpu.core_type = #tpu.core_type<tc>, window_params = [{transform_indices = @transform_0, window_bounds = array<i64: 24, 1024>}, {pipeline_mode = #tpu.pipeline_mode<synchronous>, transform_indices = @transform_1, window_bounds = array<i64: 1, 1024>}, {transform_indices = @transform_2, window_bounds = array<i64: 1024, 128>}, {transform_indices = @transform_3, window_bounds = array<i64: 24, 128>}]} {
    %c0 = arith.constant 0 : index
    %c0_0 = arith.constant 0 : index
    %0 = vector.load %arg2[%c0, %c0_0] : memref<24x1024xbf16, #tpu.memory_space<vmem>>, vector<24x1024xbf16>
    %1 = arith.extf %0 : vector<24x1024xbf16> to vector<24x1024xf32>
    %c0_1 = arith.constant 0 : index
    %c0_2 = arith.constant 0 : index
    %2 = vector.load %arg3[%c0_1, %c0_2] : memref<1x1024xbf16, #tpu.memory_space<vmem>>, vector<1x1024xbf16>
    %3 = arith.extf %2 : vector<1x1024xbf16> to vector<1x1024xf32>
    %4 = vector.broadcast %3 : vector<1x1024xf32> to vector<24x1024xf32>
    %5 = arith.addf %1, %4 : vector<24x1024xf32>
    %6 = arith.truncf %5 : vector<24x1024xf32> to vector<24x1024xbf16>
    %c0_3 = arith.constant 0 : index
    %c0_4 = arith.constant 0 : index
    %7 = vector.load %arg4[%c0_3, %c0_4] : memref<1024x128xbf16, #tpu.memory_space<vmem>>, vector<1024x128xbf16>
    %cst = arith.constant dense<0.000000e+00> : vector<24x128xf32>
    %8 = tpu.matmul %6, %7, %cst {dimension_numbers = #tpu.dot_dimension_numbers<[1], [0], [0], [1], [0, 0, 1, 1], [], []>} : vector<24x1024xbf16>, vector<1024x128xbf16>, vector<24x128xf32> -> vector<24x128xf32>
    %c0_5 = arith.constant 0 : index
    %c0_6 = arith.constant 0 : index
    %9 = vector.load %arg5[%c0_5, %c0_6] : memref<24x128xf32, #tpu.memory_space<vmem>>, vector<24x128xf32>
    tpu.vector_store %arg5[%c0_5, %c0_6], %8 {strides = array<i32>} : memref<24x128xf32, #tpu.memory_space<vmem>>, vector<24x128xf32>,
    return
  }
  func.func @transform_0(%arg0: i32, %arg1: i32) -> (i32, i32) {
    %c0_i32 = arith.constant 0 : i32
    %c0_i32_0 = arith.constant 0 : i32
    return %arg0, %c0_i32 : i32, i32
  }
  func.func @transform_1(%arg0: i32, %arg1: i32) -> (i32, i32) {
    %c0_i32 = arith.constant 0 : i32
    %c0_i32_0 = arith.constant 0 : i32
    %c0_i32_1 = arith.constant 0 : i32
    return %c0_i32, %c0_i32_0 : i32, i32
  }
  func.func @transform_2(%arg0: i32, %arg1: i32) -> (i32, i32) {
    %c0_i32 = arith.constant 0 : i32
    %c0_i32_0 = arith.constant 0 : i32
    return %c0_i32, %arg1 : i32, i32
  }
  func.func @transform_3(%arg0: i32, %arg1: i32) -> (i32, i32) {
    %c0_i32 = arith.constant 0 : i32
    return %arg0, %arg1 : i32, i32
  }
}

</mosaic_0001>

<llo_original>
// kernel: tpu_custom_call.1
$region0: #{tpu_custom_call.1}
  #allocation0 [shape = 'u32[]', space=smem, size = 0x4, offset = 0x4, fixed_abs, tag = 'smem constant byte address 0x4 - core index']
  #allocation1 [shape = 'u32[144,128]{1,0:T(1,128)}', space=vmem, size = 0x12000, scoped, tag = 'internal scratch']
  %s0 = inlined_call_operand.hbm [shape: bf16[24,1024], index: 0, kind: input, shape index: {}]
  %s1 = inlined_call_operand.hbm [shape: bf16[1,1024], index: 1, kind: input, shape index: {}]
  %s2 = inlined_call_operand.hbm [shape: bf16[1024,256], index: 2, kind: input, shape index: {}]
  %s3 = inlined_call_operand.hbm [shape: f32[24,256], index: 3, kind: output, shape index: {}]
  %s4 = sld [smem:[#allocation0]]
  $region57: #{tpu_custom_call.1} parent=0
    _
  %s6 = ssub.s32 1, %s4
  %s7 = scalar_select 0, %s6, %s4
  $region1: #{tpu_custom_call.1} parent=0
    #allocation2 [shape = 'u8[49152]{0}', space=vmem, size = 0xc000, scoped, tag = 'input window, operand 0, single buffered']
    #allocation3 [shape = 's32[2]{0}', space=sflag, size = 0x8, scoped, tag = 'scoped memory for tpu_custom_call.1']
    #allocation4 [shape = 's32[2]{0}', space=sflag, size = 0x8, scoped, tag = 'scoped memory for tpu_custom_call.1']
    #allocation5 [shape = 'u8[4096]{0}', space=vmem, size = 0x1000, scoped, tag = 'input window, operand 1, single buffered']
    #allocation6 [shape = 's32[1]{0}', space=sflag, size = 0x4, scoped, tag = 'scoped memory for tpu_custom_call.1']
    #allocation7 [shape = 'u8[524288]{0}', space=vmem, size = 0x80000, scoped, tag = 'input window, operand 2']
    #allocation8 [shape = 'u8[24576]{0}', space=vmem, size = 0x6000, scoped, tag = 'output window, operand 0']
    %8 = vsyncpa [#allocation3], 0
    %9 = vsyncpa [#allocation6], 0
    %10 = vsyncpa [#allocation4], 0
    %s11 = scalar_lea.sflag [#allocation4], 1
    %12 = vsyncpa %s11, 0
    loop: start=0, step=1, limit=4
    $region2: #{tpu_custom_call.1} parent=1 // loop_pre_header
      _
    $region3: #{tpu_custom_call.1} parent=1 // loop_header
      %s14 = sphi 0, %s18
      %p15 = scmp.ge.s32.totalorder %s14, 4
      %s21 = sphi 0, %s33
      %s22 = sphi 0, %s29
      %s23 = sphi 0, %s21
      %s24 = sphi 0, %s22
      %s25 = sphi 0, %s23
      %s26 = sphi 0, %s24
      %s36 = sphi 0, %s38
      %s39 = sphi 0, %s36
      %s40 = sphi 0, %s39
      %s56 = sphi 0, %s40
      %s60 = sphi 0, %s60
      %s62 = sphi 0, %s60
      %s63 = sphi 0, %s62
      %s77 = sphi 0, %s63
      %s83 = sphi 0, %s85
      %s86 = sphi 0, %s83
      %s87 = sphi 0, %s86
      %s103 = sphi 0, %s87
      %s111 = sphi 0, %s113
      %s114 = sphi 0, %s111
      %s115 = sphi 0, %s114
      %s131 = sphi 0, %s115
    $region4: #{tpu_custom_call.1} parent=1 // loop_header_branch
      %17 = sbr.rel (%p15) target = $region8
    $region5: #{tpu_custom_call.1} parent=1 // loop_body
      %s19 = ssub.s32 %s14, 1
      %s20 = ssub.s32 %s14, 2
      %s27 = sadd.s32 1, %s22
      %p28 = scmp.ge.s32.totalorder %s27, 2
      %s29 = scalar_select %p28, 0, %s27
      %s30 = sadd.s32 1, %s21
      %s31 = scalar_select %p28, %s30, %s21
      %p32 = scmp.ge.s32.totalorder %s31, 1
      %s33 = scalar_select %p32, 0, %s31
      %s34 = ssub.s32 %s21, %s33
      %p35 = scmp.eq.s32.totalorder %s34, 0
      %s37 = sadd.s32 %s36, 1
      %s38 = scalar_select %p35, %s36, %s37
      %p41 = pneg %p35
      %p42 = scmp.eq.s32.totalorder %s14, 1
      %p43 = por %p41, %p42
      %p44 = scmp.ne.s32.totalorder %s36, %s39
      %p45 = scmp.eq.s32.totalorder %s14, 0
      %p46 = por %p44, %p45
      %p47 = scmp.ne.s32.totalorder %s36, %s39
      %p48 = scmp.eq.s32.totalorder %s19, 1
      %p49 = por %p47, %p48
      %p50 = scmp.ne.s32.totalorder %s39, %s40
      %p51 = scmp.eq.s32.totalorder %s19, 0
      %p52 = por %p50, %p51
      %p53 = scmp.ne.s32.totalorder %s39, %s40
      %p54 = scmp.eq.s32.totalorder %s20, 1
      %p55 = por %p53, %p54
      %p57 = scmp.ne.s32.totalorder %s40, %s56
      %p58 = scmp.eq.s32.totalorder %s20, 0
      %p59 = por %p57, %p58
      %s61 = sadd.s32 %s60, 1
      %p64 = scmp.eq.s32.totalorder %s14, 1
      %p65 = scmp.ne.s32.totalorder %s60, %s62
      %p66 = scmp.eq.s32.totalorder %s14, 0
      %p67 = por %p65, %p66
      %p68 = scmp.ne.s32.totalorder %s60, %s62
      %p69 = scmp.eq.s32.totalorder %s19, 1
      %p70 = por %p68, %p69
      %p71 = scmp.ne.s32.totalorder %s62, %s63
      %p72 = scmp.eq.s32.totalorder %s19, 0
      %p73 = por %p71, %p72
      %p74 = scmp.ne.s32.totalorder %s62, %s63
      %p75 = scmp.eq.s32.totalorder %s20, 1
      %p76 = por %p74, %p75
      %p78 = scmp.ne.s32.totalorder %s63, %s77
      %p79 = scmp.eq.s32.totalorder %s20, 0
      %p80 = por %p78, %p79
      %s81 = ssub.s32 %s22, %s29
      %p82 = scmp.eq.s32.totalorder %s81, 0
      %s84 = sadd.s32 %s83, 1
      %s85 = scalar_select %p82, %s83, %s84
      %p88 = pneg %p82
      %p89 = scmp.eq.s32.totalorder %s14, 1
      %p90 = por %p88, %p89
      %p91 = scmp.ne.s32.totalorder %s83, %s86
      %p92 = scmp.eq.s32.totalorder %s14, 0
      %p93 = por %p91, %p92
      %p94 = scmp.ne.s32.totalorder %s83, %s86
      %p95 = scmp.eq.s32.totalorder %s19, 1
      %p96 = por %p94, %p95
      %p97 = scmp.ne.s32.totalorder %s86, %s87
      %p98 = scmp.eq.s32.totalorder %s19, 0
      %p99 = por %p97, %p98
      %p100 = scmp.ne.s32.totalorder %s86, %s87
      %p101 = scmp.eq.s32.totalorder %s20, 1
      %p102 = por %p100, %p101
      %p104 = scmp.ne.s32.totalorder %s87, %s103
      %p105 = scmp.eq.s32.totalorder %s20, 0
      %p106 = por %p104, %p105
      %s107 = ssub.s32 %s21, %s33
      %s108 = ssub.s32 %s22, %s29
      %s109 = sor.u32 %s107, %s108
      %p110 = scmp.eq.s32.totalorder %s109, 0
      %s112 = sadd.s32 %s111, 1
      %s113 = scalar_select %p110, %s111, %s112
      %p116 = pneg %p110
      %p117 = scmp.eq.s32.totalorder %s14, 1
      %p118 = por %p116, %p117
      %p119 = scmp.ne.s32.totalorder %s111, %s114
      %p120 = scmp.eq.s32.totalorder %s14, 0
      %p121 = por %p119, %p120
      %p122 = scmp.ne.s32.totalorder %s111, %s114
      %p123 = scmp.eq.s32.totalorder %s19, 1
      %p124 = por %p122, %p123
      %p125 = scmp.ne.s32.totalorder %s114, %s115
      %p126 = scmp.eq.s32.totalorder %s19, 0
      %p127 = por %p125, %p126
      %p128 = scmp.ne.s32.totalorder %s114, %s115
      %p129 = scmp.eq.s32.totalorder %s20, 1
      %p130 = por %p128, %p129
      %p132 = scmp.ne.s32.totalorder %s115, %s131
      %p133 = scmp.eq.s32.totalorder %s20, 0
      %p134 = por %p132, %p133
      %p135 = scmp.le.s32.totalorder 1, %s14
      %p136 = scmp.lt.s32.totalorder %s14, 3
      %p137 = pnand %p135, %p136
      %p138 = pneg %p137
      // Predicated region
      $region9: #{tpu_custom_call.1} parent=5 // pred_check
        _
      $region10: #{tpu_custom_call.1} parent=5 // pred_check_branch
        %140 = sbr.rel (%p137) target = $region12
      $region11: #{tpu_custom_call.1} parent=5 // pred_region
        %s141 = ssub.s32 %s14, 1
        // Predicated region
        $region13: #{tpu_custom_call.1} parent=11 // pred_check
          %p142 = pneg %p52
        $region14: #{tpu_custom_call.1} parent=11 // pred_check_branch
          %144 = sbr.rel (%p142) target = $region16
        $region15: #{tpu_custom_call.1} parent=11 // pred_region
          %s145 = smul.u32 3, %s23
          %s147 = ssub.s32 1536, 1536
          %148 = vsyncadd [#allocation3], %s147
          %s149 = smul.addr %s145, 8
          %s150 = smul.addr %s149, 64
          %s151 = scalar_lea.hbm %s0, %s150
          %s152 = sshll.u32 [#allocation2], 4
          %s153 = int_to_ptr.vmem [resolvable:$true] %s152
          %158 = dma.hbm_to_vmem [thread:$0]  %s151, 1536, %s153, [#allocation3], 512, 512, 32
        $region16: #{tpu_custom_call.1} parent=11 // pred_fallthru
          _
        // Predicated region
        $region17: #{tpu_custom_call.1} parent=11 // pred_check
          %p159 = pneg %p73
        $region18: #{tpu_custom_call.1} parent=11 // pred_check_branch
          %161 = sbr.rel (%p159) target = $region20
        $region19: #{tpu_custom_call.1} parent=11 // pred_region
          %s163 = ssub.s32 128, 128
          %164 = vsyncadd [#allocation6], %s163
          %s166 = sshll.u32 [#allocation5], 4
          %s167 = int_to_ptr.vmem [resolvable:$true] %s166
          %169 = dma.hbm_to_vmem [thread:$0]  %s1, 128, %s167, [#allocation6]
        $region20: #{tpu_custom_call.1} parent=11 // pred_fallthru
          _
      $region12: #{tpu_custom_call.1} parent=5 // pred_fallthru
        _
      %p170 = scmp.lt.s32.totalorder %s14, 2
      // Predicated region
      $region21: #{tpu_custom_call.1} parent=5 // pred_check
        %p171 = pneg %p170
      $region22: #{tpu_custom_call.1} parent=5 // pred_check_branch
        %173 = sbr.rel (%p171) target = $region24
      $region23: #{tpu_custom_call.1} parent=5 // pred_region
        // Predicated region
        $region25: #{tpu_custom_call.1} parent=23 // pred_check
          %p174 = pneg %p93
        $region26: #{tpu_custom_call.1} parent=23 // pred_check_branch
          %176 = sbr.rel (%p174) target = $region28
        $region27: #{tpu_custom_call.1} parent=23 // pred_region
          %s177 = sand.u32 %s14, 1
          %s178 = scalar_lea.sflag [#allocation3], %s177
          %s179 = sand.u32 %s83, 1
          %s180 = smul.addr %s179, 512
          %s181 = scalar_lea.vmem [#allocation7], %s180
          %s183 = ssub.s32 8192, 8192
          %184 = vsyncadd %s178, %s183
          %s185 = smul.addr %s22, 64
          %s186 = scalar_lea.hbm %s2, %s185
          %s187 = sshll.u32 %s181, 4
          %s188 = int_to_ptr.vmem [resolvable:$true] %s187
          %193 = dma.hbm_to_vmem [thread:$0]  %s186, 8192, %s188, %s178, 128, 64, 4
        $region28: #{tpu_custom_call.1} parent=23 // pred_fallthru
          _
      $region24: #{tpu_custom_call.1} parent=5 // pred_fallthru
        _
      %p194 = scmp.le.s32.totalorder 1, %s14
      %p195 = scmp.lt.s32.totalorder %s14, 3
      %p196 = pnand %p194, %p195
      %p197 = pneg %p196
      // Predicated region
      $region29: #{tpu_custom_call.1} parent=5 // pred_check
        _
      $region30: #{tpu_custom_call.1} parent=5 // pred_check_branch
        %199 = sbr.rel (%p196) target = $region32
      $region31: #{tpu_custom_call.1} parent=5 // pred_region
        %s200 = ssub.s32 %s14, 1
        // Predicated region
        $region33: #{tpu_custom_call.1} parent=31 // pred_check
          %p201 = pneg %p52
        $region34: #{tpu_custom_call.1} parent=31 // pred_check_branch
          %203 = sbr.rel (%p201) target = $region36
        $region35: #{tpu_custom_call.1} parent=31 // pred_region
          %204 = dma.done [#allocation3], 1536
        $region36: #{tpu_custom_call.1} parent=31 // pred_fallthru
          _
        // Predicated region
        $region37: #{tpu_custom_call.1} parent=31 // pred_check
          %p205 = pneg %p73
        $region38: #{tpu_custom_call.1} parent=31 // pred_check_branch
          %207 = sbr.rel (%p205) target = $region40
        $region39: #{tpu_custom_call.1} parent=31 // pred_region
          %208 = dma.done [#allocation6], 128
        $region40: #{tpu_custom_call.1} parent=31 // pred_fallthru
          _
        %s209 = sand.u32 %s19, 1
        %s210 = scalar_lea.sflag [#allocation3], %s209
        %s211 = sand.u32 %s86, 1
        %s212 = smul.addr %s211, 512
        %s213 = scalar_lea.vmem [#allocation7], %s212
        // Predicated region
        $region41: #{tpu_custom_call.1} parent=31 // pred_check
          %p214 = pneg %p99
        $region42: #{tpu_custom_call.1} parent=31 // pred_check_branch
          %216 = sbr.rel (%p214) target = $region44
        $region43: #{tpu_custom_call.1} parent=31 // pred_region
          %217 = dma.done %s210, 8192
        $region44: #{tpu_custom_call.1} parent=31 // pred_fallthru
          _
        %p218 = pneg %p52
        %p219 = pneg %p49
        %p220 = pneg %p73
        %p221 = pneg %p70
        %s222 = sand.u32 %s19, 1
        %s223 = scalar_lea.sflag [#allocation3], %s222
        %s224 = sand.u32 %s86, 1
        %s225 = smul.addr %s224, 512
        %s226 = scalar_lea.vmem [#allocation7], %s225
        %p227 = pneg %p99
        %p228 = pneg %p96
        %p229 = pneg %p127
        %p230 = pneg %p124
        %s231 = sand.u32 %s114, 1
        %s232 = scalar_lea.sflag [#allocation4], %s231
        %s233 = sand.u32 %s114, 1
        %s234 = smul.addr %s233, 24
        %s235 = scalar_lea.vmem [#allocation8], %s234
        %s236 = smul.u32 3, %s23
        %s237 = smul.u32 3, %s23
        %v239 = vld [vmem:[#allocation2] sm:$0xff]
        %v240 = vld [vmem:[#allocation2 + $0x8] sm:$0xff]
        %v241 = vld [vmem:[#allocation2 + $0x10] sm:$0xff]
        %v242 = vld [vmem:[#allocation2 + $0x18] sm:$0xff]
        %v243 = vld [vmem:[#allocation2 + $0x20] sm:$0xff]
        %v244 = vld [vmem:[#allocation2 + $0x28] sm:$0xff]
        %v245 = vld [vmem:[#allocation2 + $0x30] sm:$0xff]
        %v246 = vld [vmem:[#allocation2 + $0x38] sm:$0xff]
        %v247 = vld [vmem:[#allocation2 + $0x40] sm:$0xff]
        %v248 = vld [vmem:[#allocation2 + $0x48] sm:$0xff]
        %v249 = vld [vmem:[#allocation2 + $0x50] sm:$0xff]
        %v250 = vld [vmem:[#allocation2 + $0x58] sm:$0xff]
        %v251 = vunpack.c.l.bf16 %v239
        %v252 = vunpack.c.h.bf16 %v239
        %v253 = vunpack.c.l.bf16 %v240
        %v254 = vunpack.c.h.bf16 %v240
        %v255 = vunpack.c.l.bf16 %v241
        %v256 = vunpack.c.h.bf16 %v241
        %v257 = vunpack.c.l.bf16 %v242
        %v258 = vunpack.c.h.bf16 %v242
        %v259 = vunpack.c.l.bf16 %v243
        %v260 = vunpack.c.h.bf16 %v243
        %v261 = vunpack.c.l.bf16 %v244
        %v262 = vunpack.c.h.bf16 %v244
        %v263 = vunpack.c.l.bf16 %v245
        %v264 = vunpack.c.h.bf16 %v245
        %v265 = vunpack.c.l.bf16 %v246
        %v266 = vunpack.c.h.bf16 %v246
        %v267 = vunpack.c.l.bf16 %v247
        %v268 = vunpack.c.h.bf16 %v247
        %v269 = vunpack.c.l.bf16 %v248
        %v270 = vunpack.c.h.bf16 %v248
        %v271 = vunpack.c.l.bf16 %v249
        %v272 = vunpack.c.h.bf16 %v249
        %v273 = vunpack.c.l.bf16 %v250
        %v274 = vunpack.c.h.bf16 %v250
        %v275 = vld [vmem:[#allocation5] sm:$0xff]
        %v276 = vunpack.c.l.bf16 %v275
        %v277 = vunpack.c.h.bf16 %v275
        %v280 = vlaneseq
        %v281 = vshrl.u32 %v280, 7
        %v282 = vsub.s32 0, %v281
        %v283 = vrot.slane %v276, %v282
        %v284 = vlaneseq
        %v285 = vshrl.u32 %v284, 7
        %v286 = vsub.s32 2, %v285
        %v287 = vrot.slane %v276, %v286
        %v288 = vlaneseq
        %v289 = vshrl.u32 %v288, 7
        %v290 = vsub.s32 4, %v289
        %v291 = vrot.slane %v276, %v290
        %v292 = vlaneseq
        %v293 = vshrl.u32 %v292, 7
        %v294 = vsub.s32 6, %v293
        %v295 = vrot.slane %v276, %v294
        %v296 = vlaneseq
        %v297 = vshrl.u32 %v296, 7
        %v298 = vsub.s32 0, %v297
        %v299 = vrot.slane %v277, %v298
        %v300 = vlaneseq
        %v301 = vshrl.u32 %v300, 7
        %v302 = vsub.s32 2, %v301
        %v303 = vrot.slane %v277, %v302
        %v304 = vlaneseq
        %v305 = vshrl.u32 %v304, 7
        %v306 = vsub.s32 4, %v305
        %v307 = vrot.slane %v277, %v306
        %v308 = vlaneseq
        %v309 = vshrl.u32 %v308, 7
        %v310 = vsub.s32 6, %v309
        %v311 = vrot.slane %v277, %v310
        %v320 = vlaneseq
        %v321 = vshrl.u32 %v320, 7
        %v322 = vsub.s32 0, %v321
        %v323 = vrot.slane %v283, %v322
        %v324 = vlaneseq
        %v325 = vshrl.u32 %v324, 7
        %v326 = vsub.s32 0, %v325
        %v327 = vrot.slane %v287, %v326
        %v328 = vlaneseq
        %v329 = vshrl.u32 %v328, 7
        %v330 = vsub.s32 0, %v329
        %v331 = vrot.slane %v291, %v330
        %v332 = vlaneseq
        %v333 = vshrl.u32 %v332, 7
        %v334 = vsub.s32 0, %v333
        %v335 = vrot.slane %v295, %v334
        %v336 = vlaneseq
        %v337 = vshrl.u32 %v336, 7
        %v338 = vsub.s32 0, %v337
        %v339 = vrot.slane %v299, %v338
        %v340 = vlaneseq
        %v341 = vshrl.u32 %v340, 7
        %v342 = vsub.s32 0, %v341
        %v343 = vrot.slane %v303, %v342
        %v344 = vlaneseq
        %v345 = vshrl.u32 %v344, 7
        %v346 = vsub.s32 0, %v345
        %v347 = vrot.slane %v307, %v346
        %v348 = vlaneseq
        %v349 = vshrl.u32 %v348, 7
        %v350 = vsub.s32 0, %v349
        %v351 = vrot.slane %v311, %v350
        %v352 = vadd.f32 %v251, %v323
        %v353 = vadd.f32 %v252, %v327
        %v354 = vadd.f32 %v253, %v331
        %v355 = vadd.f32 %v254, %v335
        %v356 = vadd.f32 %v255, %v339
        %v357 = vadd.f32 %v256, %v343
        %v358 = vadd.f32 %v257, %v347
        %v359 = vadd.f32 %v258, %v351
        %v360 = vadd.f32 %v259, %v323
        %v361 = vadd.f32 %v260, %v327
        %v362 = vadd.f32 %v261, %v331
        %v363 = vadd.f32 %v262, %v335
        %v364 = vadd.f32 %v263, %v339
        %v365 = vadd.f32 %v264, %v343
        %v366 = vadd.f32 %v265, %v347
        %v367 = vadd.f32 %v266, %v351
        %v368 = vadd.f32 %v267, %v323
        %v369 = vadd.f32 %v268, %v327
        %v370 = vadd.f32 %v269, %v331
        %v371 = vadd.f32 %v270, %v335
        %v372 = vadd.f32 %v271, %v339
        %v373 = vadd.f32 %v272, %v343
        %v374 = vadd.f32 %v273, %v347
        %v375 = vadd.f32 %v274, %v351
        %v376 = vpack.c.bf16 %v360, %v352
        %v377 = vpack.c.bf16 %v361, %v353
        %v378 = vpack.c.bf16 %v362, %v354
        %v379 = vpack.c.bf16 %v363, %v355
        %v380 = vpack.c.bf16 %v364, %v356
        %v381 = vpack.c.bf16 %v365, %v357
        %v382 = vpack.c.bf16 %v366, %v358
        %v383 = vpack.c.bf16 %v367, %v359
        %v384 = vpack.c.bf16 %v368, %v368
        %v385 = vpack.c.bf16 %v369, %v369
        %v386 = vpack.c.bf16 %v370, %v370
        %v387 = vpack.c.bf16 %v371, %v371
        %v388 = vpack.c.bf16 %v372, %v372
        %v389 = vpack.c.bf16 %v373, %v373
        %v390 = vpack.c.bf16 %v374, %v374
        %v391 = vpack.c.bf16 %v375, %v375
        %v392 = vld [vmem:[%s213] sm:$0xf]
        %v393 = vld [vmem:[%s213 + $0x4] sm:$0xf]
        %v394 = vld [vmem:[%s213 + $0x8] sm:$0xf]
        %v395 = vld [vmem:[%s213 + $0xc] sm:$0xf]
        %v396 = vld [vmem:[%s213 + $0x10] sm:$0xf]
        %v397 = vld [vmem:[%s213 + $0x14] sm:$0xf]
        %v398 = vld [vmem:[%s213 + $0x18] sm:$0xf]
        %v399 = vld [vmem:[%s213 + $0x1c] sm:$0xf]
        %v400 = vld [vmem:[%s213 + $0x20] sm:$0xf]
        %v401 = vld [vmem:[%s213 + $0x24] sm:$0xf]
        %v402 = vld [vmem:[%s213 + $0x28] sm:$0xf]
        %v403 = vld [vmem:[%s213 + $0x2c] sm:$0xf]
        %v404 = vld [vmem:[%s213 + $0x30] sm:$0xf]
        %v405 = vld [vmem:[%s213 + $0x34] sm:$0xf]
        %v406 = vld [vmem:[%s213 + $0x38] sm:$0xf]
        %v407 = vld [vmem:[%s213 + $0x3c] sm:$0xf]
        %v408 = vld [vmem:[%s213 + $0x40] sm:$0xf]
        %v409 = vld [vmem:[%s213 + $0x44] sm:$0xf]
        %v410 = vld [vmem:[%s213 + $0x48] sm:$0xf]
        %v411 = vld [vmem:[%s213 + $0x4c] sm:$0xf]
        %v412 = vld [vmem:[%s213 + $0x50] sm:$0xf]
        %v413 = vld [vmem:[%s213 + $0x54] sm:$0xf]
        %v414 = vld [vmem:[%s213 + $0x58] sm:$0xf]
        %v415 = vld [vmem:[%s213 + $0x5c] sm:$0xf]
        %v416 = vld [vmem:[%s213 + $0x60] sm:$0xf]
        %v417 = vld [vmem:[%s213 + $0x64] sm:$0xf]
        %v418 = vld [vmem:[%s213 + $0x68] sm:$0xf]
        %v419 = vld [vmem:[%s213 + $0x6c] sm:$0xf]
        %v420 = vld [vmem:[%s213 + $0x70] sm:$0xf]
        %v421 = vld [vmem:[%s213 + $0x74] sm:$0xf]
        %v422 = vld [vmem:[%s213 + $0x78] sm:$0xf]
        %v423 = vld [vmem:[%s213 + $0x7c] sm:$0xf]
        %v424 = vld [vmem:[%s213 + $0x80] sm:$0xf]
        %v425 = vld [vmem:[%s213 + $0x84] sm:$0xf]
        %v426 = vld [vmem:[%s213 + $0x88] sm:$0xf]
        %v427 = vld [vmem:[%s213 + $0x8c] sm:$0xf]
        %v428 = vld [vmem:[%s213 + $0x90] sm:$0xf]
        %v429 = vld [vmem:[%s213 + $0x94] sm:$0xf]
        %v430 = vld [vmem:[%s213 + $0x98] sm:$0xf]
        %v431 = vld [vmem:[%s213 + $0x9c] sm:$0xf]
        %v432 = vld [vmem:[%s213 + $0xa0] sm:$0xf]
        %v433 = vld [vmem:[%s213 + $0xa4] sm:$0xf]
        %v434 = vld [vmem:[%s213 + $0xa8] sm:$0xf]
        %v435 = vld [vmem:[%s213 + $0xac] sm:$0xf]
        %v436 = vld [vmem:[%s213 + $0xb0] sm:$0xf]
        %v437 = vld [vmem:[%s213 + $0xb4] sm:$0xf]
        %v438 = vld [vmem:[%s213 + $0xb8] sm:$0xf]
        %v439 = vld [vmem:[%s213 + $0xbc] sm:$0xf]
        %v440 = vld [vmem:[%s213 + $0xc0] sm:$0xf]
        %v441 = vld [vmem:[%s213 + $0xc4] sm:$0xf]
        %v442 = vld [vmem:[%s213 + $0xc8] sm:$0xf]
        %v443 = vld [vmem:[%s213 + $0xcc] sm:$0xf]
        %v444 = vld [vmem:[%s213 + $0xd0] sm:$0xf]
        %v445 = vld [vmem:[%s213 + $0xd4] sm:$0xf]
        %v446 = vld [vmem:[%s213 + $0xd8] sm:$0xf]
        %v447 = vld [vmem:[%s213 + $0xdc] sm:$0xf]
        %v448 = vld [vmem:[%s213 + $0xe0] sm:$0xf]
        %v449 = vld [vmem:[%s213 + $0xe4] sm:$0xf]
        %v450 = vld [vmem:[%s213 + $0xe8] sm:$0xf]
        %v451 = vld [vmem:[%s213 + $0xec] sm:$0xf]
        %v452 = vld [vmem:[%s213 + $0xf0] sm:$0xf]
        %v453 = vld [vmem:[%s213 + $0xf4] sm:$0xf]
        %v454 = vld [vmem:[%s213 + $0xf8] sm:$0xf]
        %v455 = vld [vmem:[%s213 + $0xfc] sm:$0xf]
        %v456 = vld [vmem:[%s213 + $0x100] sm:$0xf]
        %v457 = vld [vmem:[%s213 + $0x104] sm:$0xf]
        %v458 = vld [vmem:[%s213 + $0x108] sm:$0xf]
        %v459 = vld [vmem:[%s213 + $0x10c] sm:$0xf]
        %v460 = vld [vmem:[%s213 + $0x110] sm:$0xf]
        %v461 = vld [vmem:[%s213 + $0x114] sm:$0xf]
        %v462 = vld [vmem:[%s213 + $0x118] sm:$0xf]
        %v463 = vld [vmem:[%s213 + $0x11c] sm:$0xf]
        %v464 = vld [vmem:[%s213 + $0x120] sm:$0xf]
        %v465 = vld [vmem:[%s213 + $0x124] sm:$0xf]
        %v466 = vld [vmem:[%s213 + $0x128] sm:$0xf]
        %v467 = vld [vmem:[%s213 + $0x12c] sm:$0xf]
        %v468 = vld [vmem:[%s213 + $0x130] sm:$0xf]
        %v469 = vld [vmem:[%s213 + $0x134] sm:$0xf]
        %v470 = vld [vmem:[%s213 + $0x138] sm:$0xf]
        %v471 = vld [vmem:[%s213 + $0x13c] sm:$0xf]
        %v472 = vld [vmem:[%s213 + $0x140] sm:$0xf]
        %v473 = vld [vmem:[%s213 + $0x144] sm:$0xf]
        %v474 = vld [vmem:[%s213 + $0x148] sm:$0xf]
        %v475 = vld [vmem:[%s213 + $0x14c] sm:$0xf]
        %v476 = vld [vmem:[%s213 + $0x150] sm:$0xf]
        %v477 = vld [vmem:[%s213 + $0x154] sm:$0xf]
        %v478 = vld [vmem:[%s213 + $0x158] sm:$0xf]
        %v479 = vld [vmem:[%s213 + $0x15c] sm:$0xf]
        %v480 = vld [vmem:[%s213 + $0x160] sm:$0xf]
        %v481 = vld [vmem:[%s213 + $0x164] sm:$0xf]
        %v482 = vld [vmem:[%s213 + $0x168] sm:$0xf]
        %v483 = vld [vmem:[%s213 + $0x16c] sm:$0xf]
        %v484 = vld [vmem:[%s213 + $0x170] sm:$0xf]
        %v485 = vld [vmem:[%s213 + $0x174] sm:$0xf]
        %v486 = vld [vmem:[%s213 + $0x178] sm:$0xf]
        %v487 = vld [vmem:[%s213 + $0x17c] sm:$0xf]
        %v488 = vld [vmem:[%s213 + $0x180] sm:$0xf]
        %v489 = vld [vmem:[%s213 + $0x184] sm:$0xf]
        %v490 = vld [vmem:[%s213 + $0x188] sm:$0xf]
        %v491 = vld [vmem:[%s213 + $0x18c] sm:$0xf]
        %v492 = vld [vmem:[%s213 + $0x190] sm:$0xf]
        %v493 = vld [vmem:[%s213 + $0x194] sm:$0xf]
        %v494 = vld [vmem:[%s213 + $0x198] sm:$0xf]
        %v495 = vld [vmem:[%s213 + $0x19c] sm:$0xf]
        %v496 = vld [vmem:[%s213 + $0x1a0] sm:$0xf]
        %v497 = vld [vmem:[%s213 + $0x1a4] sm:$0xf]
        %v498 = vld [vmem:[%s213 + $0x1a8] sm:$0xf]
        %v499 = vld [vmem:[%s213 + $0x1ac] sm:$0xf]
        %v500 = vld [vmem:[%s213 + $0x1b0] sm:$0xf]
        %v501 = vld [vmem:[%s213 + $0x1b4] sm:$0xf]
        %v502 = vld [vmem:[%s213 + $0x1b8] sm:$0xf]
        %v503 = vld [vmem:[%s213 + $0x1bc] sm:$0xf]
        %v504 = vld [vmem:[%s213 + $0x1c0] sm:$0xf]
        %v505 = vld [vmem:[%s213 + $0x1c4] sm:$0xf]
        %v506 = vld [vmem:[%s213 + $0x1c8] sm:$0xf]
        %v507 = vld [vmem:[%s213 + $0x1cc] sm:$0xf]
        %v508 = vld [vmem:[%s213 + $0x1d0] sm:$0xf]
        %v509 = vld [vmem:[%s213 + $0x1d4] sm:$0xf]
        %v510 = vld [vmem:[%s213 + $0x1d8] sm:$0xf]
        %v511 = vld [vmem:[%s213 + $0x1dc] sm:$0xf]
        %v512 = vld [vmem:[%s213 + $0x1e0] sm:$0xf]
        %v513 = vld [vmem:[%s213 + $0x1e4] sm:$0xf]
        %v514 = vld [vmem:[%s213 + $0x1e8] sm:$0xf]
        %v515 = vld [vmem:[%s213 + $0x1ec] sm:$0xf]
        %v516 = vld [vmem:[%s213 + $0x1f0] sm:$0xf]
        %v517 = vld [vmem:[%s213 + $0x1f4] sm:$0xf]
        %v518 = vld [vmem:[%s213 + $0x1f8] sm:$0xf]
        %v519 = vld [vmem:[%s213 + $0x1fc] sm:$0xf]
        %v648 = vunpack.c.l.b16 %v392
        %v649 = vunpack.c.l.b16 %v393
        %v650 = vunpack.c.l.b16 %v394
        %v651 = vunpack.c.l.b16 %v395
        %v652 = vunpack.c.l.b16 %v396
        %v653 = vunpack.c.l.b16 %v397
        %v654 = vunpack.c.l.b16 %v398
        %v655 = vunpack.c.l.b16 %v399
        %v656 = vunpack.c.l.b16 %v400
        %v657 = vunpack.c.l.b16 %v401
        %v658 = vunpack.c.l.b16 %v402
        %v659 = vunpack.c.l.b16 %v403
        %v660 = vunpack.c.l.b16 %v404
        %v661 = vunpack.c.l.b16 %v405
        %v662 = vunpack.c.l.b16 %v406
        %v663 = vunpack.c.l.b16 %v407
        %v664 = vunpack.c.l.b16 %v408
        %v665 = vunpack.c.l.b16 %v409
        %v666 = vunpack.c.l.b16 %v410
        %v667 = vunpack.c.l.b16 %v411
        %v668 = vunpack.c.l.b16 %v412
        %v669 = vunpack.c.l.b16 %v413
        %v670 = vunpack.c.l.b16 %v414
        %v671 = vunpack.c.l.b16 %v415
        %v672 = vunpack.c.l.b16 %v416
        %v673 = vunpack.c.l.b16 %v417
        %v674 = vunpack.c.l.b16 %v418
        %v675 = vunpack.c.l.b16 %v419
        %v676 = vunpack.c.l.b16 %v420
        %v677 = vunpack.c.l.b16 %v421
        %v678 = vunpack.c.l.b16 %v422
        %v679 = vunpack.c.l.b16 %v423
        %v680 = vunpack.c.l.b16 %v424
        %v681 = vunpack.c.l.b16 %v425
        %v682 = vunpack.c.l.b16 %v426
        %v683 = vunpack.c.l.b16 %v427
        %v684 = vunpack.c.l.b16 %v428
        %v685 = vunpack.c.l.b16 %v429
        %v686 = vunpack.c.l.b16 %v430
        %v687 = vunpack.c.l.b16 %v431
        %v688 = vunpack.c.l.b16 %v432
        %v689 = vunpack.c.l.b16 %v433
        %v690 = vunpack.c.l.b16 %v434
        %v691 = vunpack.c.l.b16 %v435
        %v692 = vunpack.c.l.b16 %v436
        %v693 = vunpack.c.l.b16 %v437
        %v694 = vunpack.c.l.b16 %v438
        %v695 = vunpack.c.l.b16 %v439
        %v696 = vunpack.c.l.b16 %v440
        %v697 = vunpack.c.l.b16 %v441
        %v698 = vunpack.c.l.b16 %v442
        %v699 = vunpack.c.l.b16 %v443
        %v700 = vunpack.c.l.b16 %v444
        %v701 = vunpack.c.l.b16 %v445
        %v702 = vunpack.c.l.b16 %v446
        %v703 = vunpack.c.l.b16 %v447
        %v704 = vunpack.c.l.b16 %v448
        %v705 = vunpack.c.l.b16 %v449
        %v706 = vunpack.c.l.b16 %v450
        %v707 = vunpack.c.l.b16 %v451
        %v708 = vunpack.c.l.b16 %v452
        %v709 = vunpack.c.l.b16 %v453
        %v710 = vunpack.c.l.b16 %v454
        %v711 = vunpack.c.l.b16 %v455
        %v712 = vunpack.c.l.b16 %v456
        %v713 = vunpack.c.l.b16 %v457
        %v714 = vunpack.c.l.b16 %v458
        %v715 = vunpack.c.l.b16 %v459
        %v716 = vunpack.c.l.b16 %v460
        %v717 = vunpack.c.l.b16 %v461
        %v718 = vunpack.c.l.b16 %v462
        %v719 = vunpack.c.l.b16 %v463
        %v720 = vunpack.c.l.b16 %v464
        %v721 = vunpack.c.l.b16 %v465
        %v722 = vunpack.c.l.b16 %v466
        %v723 = vunpack.c.l.b16 %v467
        %v724 = vunpack.c.l.b16 %v468
        %v725 = vunpack.c.l.b16 %v469
        %v726 = vunpack.c.l.b16 %v470
        %v727 = vunpack.c.l.b16 %v471
        %v728 = vunpack.c.l.b16 %v472
        %v729 = vunpack.c.l.b16 %v473
        %v730 = vunpack.c.l.b16 %v474
        %v731 = vunpack.c.l.b16 %v475
        %v732 = vunpack.c.l.b16 %v476
        %v733 = vunpack.c.l.b16 %v477
        %v734 = vunpack.c.l.b16 %v478
        %v735 = vunpack.c.l.b16 %v479
        %v736 = vunpack.c.l.b16 %v480
        %v737 = vunpack.c.l.b16 %v481
        %v738 = vunpack.c.l.b16 %v482
        %v739 = vunpack.c.l.b16 %v483
        %v740 = vunpack.c.l.b16 %v484
        %v741 = vunpack.c.l.b16 %v485
        %v742 = vunpack.c.l.b16 %v486
        %v743 = vunpack.c.l.b16 %v487
        %v744 = vunpack.c.l.b16 %v488
        %v745 = vunpack.c.l.b16 %v489
        %v746 = vunpack.c.l.b16 %v490
        %v747 = vunpack.c.l.b16 %v491
        %v748 = vunpack.c.l.b16 %v492
        %v749 = vunpack.c.l.b16 %v493
        %v750 = vunpack.c.l.b16 %v494
        %v751 = vunpack.c.l.b16 %v495
        %v752 = vunpack.c.l.b16 %v496
        %v753 = vunpack.c.l.b16 %v497
        %v754 = vunpack.c.l.b16 %v498
        %v755 = vunpack.c.l.b16 %v499
        %v756 = vunpack.c.l.b16 %v500
        %v757 = vunpack.c.l.b16 %v501
        %v758 = vunpack.c.l.b16 %v502
        %v759 = vunpack.c.l.b16 %v503
        %v760 = vunpack.c.l.b16 %v504
        %v761 = vunpack.c.l.b16 %v505
        %v762 = vunpack.c.l.b16 %v506
        %v763 = vunpack.c.l.b16 %v507
        %v764 = vunpack.c.l.b16 %v508
        %v765 = vunpack.c.l.b16 %v509
        %v766 = vunpack.c.l.b16 %v510
        %v767 = vunpack.c.l.b16 %v511
        %v768 = vunpack.c.l.b16 %v512
        %v769 = vunpack.c.l.b16 %v513
        %v770 = vunpack.c.l.b16 %v514
        %v771 = vunpack.c.l.b16 %v515
        %v772 = vunpack.c.l.b16 %v516
        %v773 = vunpack.c.l.b16 %v517
        %v774 = vunpack.c.l.b16 %v518
        %v775 = vunpack.c.l.b16 %v519
        %v776 = vpack.c.b16 %v649, %v648
        %v777 = vpack.c.b16 %v651, %v650
        %v778 = vpack.c.b16 %v653, %v652
        %v779 = vpack.c.b16 %v655, %v654
        %v780 = vpack.c.b16 %v657, %v656
        %v781 = vpack.c.b16 %v659, %v658
        %v782 = vpack.c.b16 %v661, %v660
        %v783 = vpack.c.b16 %v663, %v662
        %v784 = vpack.c.b16 %v665, %v664
        %v785 = vpack.c.b16 %v667, %v666
        %v786 = vpack.c.b16 %v669, %v668
        %v787 = vpack.c.b16 %v671, %v670
        %v788 = vpack.c.b16 %v673, %v672
        %v789 = vpack.c.b16 %v675, %v674
        %v790 = vpack.c.b16 %v677, %v676
        %v791 = vpack.c.b16 %v679, %v678
        %v792 = vpack.c.b16 %v681, %v680
        %v793 = vpack.c.b16 %v683, %v682
        %v794 = vpack.c.b16 %v685, %v684
        %v795 = vpack.c.b16 %v687, %v686
        %v796 = vpack.c.b16 %v689, %v688
        %v797 = vpack.c.b16 %v691, %v690
        %v798 = vpack.c.b16 %v693, %v692
        %v799 = vpack.c.b16 %v695, %v694
        %v800 = vpack.c.b16 %v697, %v696
        %v801 = vpack.c.b16 %v699, %v698
        %v802 = vpack.c.b16 %v701, %v700
        %v803 = vpack.c.b16 %v703, %v702
        %v804 = vpack.c.b16 %v705, %v704
        %v805 = vpack.c.b16 %v707, %v706
        %v806 = vpack.c.b16 %v709, %v708
        %v807 = vpack.c.b16 %v711, %v710
        %v808 = vpack.c.b16 %v713, %v712
        %v809 = vpack.c.b16 %v715, %v714
        %v810 = vpack.c.b16 %v717, %v716
        %v811 = vpack.c.b16 %v719, %v718
        %v812 = vpack.c.b16 %v721, %v720
        %v813 = vpack.c.b16 %v723, %v722
        %v814 = vpack.c.b16 %v725, %v724
        %v815 = vpack.c.b16 %v727, %v726
        %v816 = vpack.c.b16 %v729, %v728
        %v817 = vpack.c.b16 %v731, %v730
        %v818 = vpack.c.b16 %v733, %v732
        %v819 = vpack.c.b16 %v735, %v734
        %v820 = vpack.c.b16 %v737, %v736
        %v821 = vpack.c.b16 %v739, %v738
        %v822 = vpack.c.b16 %v741, %v740
        %v823 = vpack.c.b16 %v743, %v742
        %v824 = vpack.c.b16 %v745, %v744
        %v825 = vpack.c.b16 %v747, %v746
        %v826 = vpack.c.b16 %v749, %v748
        %v827 = vpack.c.b16 %v751, %v750
        %v828 = vpack.c.b16 %v753, %v752
        %v829 = vpack.c.b16 %v755, %v754
        %v830 = vpack.c.b16 %v757, %v756
        %v831 = vpack.c.b16 %v759, %v758
        %v832 = vpack.c.b16 %v761, %v760
        %v833 = vpack.c.b16 %v763, %v762
        %v834 = vpack.c.b16 %v765, %v764
        %v835 = vpack.c.b16 %v767, %v766
        %v836 = vpack.c.b16 %v769, %v768
        %v837 = vpack.c.b16 %v771, %v770
        %v838 = vpack.c.b16 %v773, %v772
        %v839 = vpack.c.b16 %v775, %v774
        %904 = vmatprep.subr.bf16.mxu0 0
        %905 = vmatpush1.bf16.msra.mxu0 %v776
        %906 = vmatprep.subr.bf16.mxu0 0
        %907 = vmatpush1.bf16.msra.mxu0 %v777
        %908 = vmatprep.subr.bf16.mxu0 0
        %909 = vmatpush1.bf16.msra.mxu0 %v778
        %910 = vmatprep.subr.bf16.mxu0 0
        %911 = vmatpush1.bf16.msra.mxu0 %v779
        %912 = vmatprep.subr.bf16.mxu0 0
        %913 = vmatpush1.bf16.msra.mxu0 %v780
        %914 = vmatprep.subr.bf16.mxu0 0
        %915 = vmatpush1.bf16.msra.mxu0 %v781
        %916 = vmatprep.subr.bf16.mxu0 0
        %917 = vmatpush1.bf16.msra.mxu0 %v782
        %918 = vmatprep.subr.bf16.mxu0 0
        %919 = vmatpush1.bf16.msra.mxu0 %v783
        %920 = vmatprep.subr.bf16.mxu0 0
        %921 = vmatpush1.bf16.msra.mxu0 %v784
        %922 = vmatprep.subr.bf16.mxu0 0
        %923 = vmatpush1.bf16.msra.mxu0 %v785
        %924 = vmatprep.subr.bf16.mxu0 0
        %925 = vmatpush1.bf16.msra.mxu0 %v786
        %926 = vmatprep.subr.bf16.mxu0 0
        %927 = vmatpush1.bf16.msra.mxu0 %v787
        %928 = vmatprep.subr.bf16.mxu0 0
        %929 = vmatpush1.bf16.msra.mxu0 %v788
        %930 = vmatprep.subr.bf16.mxu0 0
        %931 = vmatpush1.bf16.msra.mxu0 %v789
        %932 = vmatprep.subr.bf16.mxu0 0
        %933 = vmatpush1.bf16.msra.mxu0 %v790
        %934 = vmatprep.subr.bf16.mxu0 0
        %935 = vmatpush1.bf16.msra.mxu0 %v791
        %936 = vmatprep.mubr.bf16.mxu0 %v377
        %937 = vmatmul.mubr.bf16.gmra.mrb[0].mxu0 %v376
        %v938 = vpop.f32.mrb[0].mxu0
        %v939 = vadd.f32 0.0, %v938
        %v940 = vpop.f32.mrb[0].mxu0
        %v941 = vpop.f32.mrb[0].mxu0
        %v942 = vadd.f32 0.0, %v941
        %v943 = vpop.f32.mrb[0].mxu0
        %944 = vmatprep.mubr.bf16.mxu0 %v385
        %945 = vmatmul.mubr.bf16.gmra.mrb[0].mxu0 %v384
        %v946 = vpop.f32.mrb[0].mxu0
        %v947 = vadd.f32 0.0, %v946
        %v948 = vpop.f32.mrb[0].mxu0
        %v949 = vpop.f32.mrb[0].mxu0
        %v950 = vpop.f32.mrb[0].mxu0
        %951 = vdwg.mxu0
        %952 = vmatprep.subr.bf16.mxu0 0
        %953 = vmatpush1.bf16.msra.mxu0 %v792
        %954 = vmatprep.subr.bf16.mxu0 0
        %955 = vmatpush1.bf16.msra.mxu0 %v793
        %956 = vmatprep.subr.bf16.mxu0 0
        %957 = vmatpush1.bf16.msra.mxu0 %v794
        %958 = vmatprep.subr.bf16.mxu0 0
        %959 = vmatpush1.bf16.msra.mxu0 %v795
        %960 = vmatprep.subr.bf16.mxu0 0
        %961 = vmatpush1.bf16.msra.mxu0 %v796
        %962 = vmatprep.subr.bf16.mxu0 0
        %963 = vmatpush1.bf16.msra.mxu0 %v797
        %964 = vmatprep.subr.bf16.mxu0 0
        %965 = vmatpush1.bf16.msra.mxu0 %v798
        %966 = vmatprep.subr.bf16.mxu0 0
        %967 = vmatpush1.bf16.msra.mxu0 %v799
        %968 = vmatprep.subr.bf16.mxu0 0
        %969 = vmatpush1.bf16.msra.mxu0 %v800
        %970 = vmatprep.subr.bf16.mxu0 0
        %971 = vmatpush1.bf16.msra.mxu0 %v801
        %972 = vmatprep.subr.bf16.mxu0 0
        %973 = vmatpush1.bf16.msra.mxu0 %v802
        %974 = vmatprep.subr.bf16.mxu0 0
        %975 = vmatpush1.bf16.msra.mxu0 %v803
        %976 = vmatprep.subr.bf16.mxu0 0
        %977 = vmatpush1.bf16.msra.mxu0 %v804
        %978 = vmatprep.subr.bf16.mxu0 0
        %979 = vmatpush1.bf16.msra.mxu0 %v805
        %980 = vmatprep.subr.bf16.mxu0 0
        %981 = vmatpush1.bf16.msra.mxu0 %v806
        %982 = vmatprep.subr.bf16.mxu0 0
        %983 = vmatpush1.bf16.msra.mxu0 %v807
        %984 = vmatprep.mubr.bf16.mxu0 %v379
        %985 = vmatmul.mubr.bf16.gmra.mrb[0].mxu0 %v378
        %v986 = vpop.f32.mrb[0].mxu0
        %v987 = vadd.f32 %v939, %v986
        %v988 = vpop.f32.mrb[0].mxu0
        %v989 = vpop.f32.mrb[0].mxu0
        %v990 = vadd.f32 %v942, %v989
        %v991 = vpop.f32.mrb[0].mxu0
        %992 = vmatprep.mubr.bf16.mxu0 %v387
        %993 = vmatmul.mubr.bf16.gmra.mrb[0].mxu0 %v386
        %v994 = vpop.f32.mrb[0].mxu0
        %v995 = vadd.f32 %v947, %v994
        %v996 = vpop.f32.mrb[0].mxu0
        %v997 = vpop.f32.mrb[0].mxu0
        %v998 = vpop.f32.mrb[0].mxu0
        %999 = vdwg.mxu0
        %1000 = vmatprep.subr.bf16.mxu0 0
        %1001 = vmatpush1.bf16.msra.mxu0 %v808
        %1002 = vmatprep.subr.bf16.mxu0 0
        %1003 = vmatpush1.bf16.msra.mxu0 %v809
        %1004 = vmatprep.subr.bf16.mxu0 0
        %1005 = vmatpush1.bf16.msra.mxu0 %v810
        %1006 = vmatprep.subr.bf16.mxu0 0
        %1007 = vmatpush1.bf16.msra.mxu0 %v811
        %1008 = vmatprep.subr.bf16.mxu0 0
        %1009 = vmatpush1.bf16.msra.mxu0 %v812
        %1010 = vmatprep.subr.bf16.mxu0 0
        %1011 = vmatpush1.bf16.msra.mxu0 %v813
        %1012 = vmatprep.subr.bf16.mxu0 0
        %1013 = vmatpush1.bf16.msra.mxu0 %v814
        %1014 = vmatprep.subr.bf16.mxu0 0
        %1015 = vmatpush1.bf16.msra.mxu0 %v815
        %1016 = vmatprep.subr.bf16.mxu0 0
        %1017 = vmatpush1.bf16.msra.mxu0 %v816
        %1018 = vmatprep.subr.bf16.mxu0 0
        %1019 = vmatpush1.bf16.msra.mxu0 %v817
        %1020 = vmatprep.subr.bf16.mxu0 0
        %1021 = vmatpush1.bf16.msra.mxu0 %v818
        %1022 = vmatprep.subr.bf16.mxu0 0
        %1023 = vmatpush1.bf16.msra.mxu0 %v819
        %1024 = vmatprep.subr.bf16.mxu0 0
        %1025 = vmatpush1.bf16.msra.mxu0 %v820
        %1026 = vmatprep.subr.bf16.mxu0 0
        %1027 = vmatpush1.bf16.msra.mxu0 %v821
        %1028 = vmatprep.subr.bf16.mxu0 0
        %1029 = vmatpush1.bf16.msra.mxu0 %v822
        %1030 = vmatprep.subr.bf16.mxu0 0
        %1031 = vmatpush1.bf16.msra.mxu0 %v823
        %1032 = vmatprep.mubr.bf16.mxu0 %v381
        %1033 = vmatmul.mubr.bf16.gmra.mrb[0].mxu0 %v380
        %v1034 = vpop.f32.mrb[0].mxu0
        %v1035 = vadd.f32 %v987, %v1034
        %v1036 = vpop.f32.mrb[0].mxu0
        %v1037 = vpop.f32.mrb[0].mxu0
        %v1038 = vadd.f32 %v990, %v1037
        %v1039 = vpop.f32.mrb[0].mxu0
        %1040 = vmatprep.mubr.bf16.mxu0 %v389
        %1041 = vmatmul.mubr.bf16.gmra.mrb[0].mxu0 %v388
        %v1042 = vpop.f32.mrb[0].mxu0
        %v1043 = vadd.f32 %v995, %v1042
        %v1044 = vpop.f32.mrb[0].mxu0
        %v1045 = vpop.f32.mrb[0].mxu0
        %v1046 = vpop.f32.mrb[0].mxu0
        %1047 = vdwg.mxu0
        %1048 = vmatprep.subr.bf16.mxu0 0
        %1049 = vmatpush1.bf16.msra.mxu0 %v824
        %1050 = vmatprep.subr.bf16.mxu0 0
        %1051 = vmatpush1.bf16.msra.mxu0 %v825
        %1052 = vmatprep.subr.bf16.mxu0 0
        %1053 = vmatpush1.bf16.msra.mxu0 %v826
        %1054 = vmatprep.subr.bf16.mxu0 0
        %1055 = vmatpush1.bf16.msra.mxu0 %v827
        %1056 = vmatprep.subr.bf16.mxu0 0
        %1057 = vmatpush1.bf16.msra.mxu0 %v828
        %1058 = vmatprep.subr.bf16.mxu0 0
        %1059 = vmatpush1.bf16.msra.mxu0 %v829
        %1060 = vmatprep.subr.bf16.mxu0 0
        %1061 = vmatpush1.bf16.msra.mxu0 %v830
        %1062 = vmatprep.subr.bf16.mxu0 0
        %1063 = vmatpush1.bf16.msra.mxu0 %v831
        %1064 = vmatprep.subr.bf16.mxu0 0
        %1065 = vmatpush1.bf16.msra.mxu0 %v832
        %1066 = vmatprep.subr.bf16.mxu0 0
        %1067 = vmatpush1.bf16.msra.mxu0 %v833
        %1068 = vmatprep.subr.bf16.mxu0 0
        %1069 = vmatpush1.bf16.msra.mxu0 %v834
        %1070 = vmatprep.subr.bf16.mxu0 0
        %1071 = vmatpush1.bf16.msra.mxu0 %v835
        %1072 = vmatprep.subr.bf16.mxu0 0
        %1073 = vmatpush1.bf16.msra.mxu0 %v836
        %1074 = vmatprep.subr.bf16.mxu0 0
        %1075 = vmatpush1.bf16.msra.mxu0 %v837
        %1076 = vmatprep.subr.bf16.mxu0 0
        %1077 = vmatpush1.bf16.msra.mxu0 %v838
        %1078 = vmatprep.subr.bf16.mxu0 0
        %1079 = vmatpush1.bf16.msra.mxu0 %v839
        %1080 = vmatprep.mubr.bf16.mxu0 %v383
        %1081 = vmatmul.mubr.bf16.gmra.mrb[0].mxu0 %v382
        %v1082 = vpop.f32.mrb[0].mxu0
        %v1083 = vadd.f32 %v1035, %v1082
        %v1084 = vpop.f32.mrb[0].mxu0
        %v1085 = vpop.f32.mrb[0].mxu0
        %v1086 = vadd.f32 %v1038, %v1085
        %v1087 = vpop.f32.mrb[0].mxu0
        %1088 = vmatprep.mubr.bf16.mxu0 %v391
        %1089 = vmatmul.mubr.bf16.gmra.mrb[0].mxu0 %v390
        %v1090 = vpop.f32.mrb[0].mxu0
        %v1091 = vadd.f32 %v1043, %v1090
        %v1092 = vpop.f32.mrb[0].mxu0
        %v1093 = vpop.f32.mrb[0].mxu0
        %v1094 = vpop.f32.mrb[0].mxu0
        %1095 = vdwg.mxu0
        %1096 = vst [vmem:[%s235] sm:$0xff] %v1083
        %1097 = vst [vmem:[%s235 + $0x8] sm:$0xff] %v1086
        %1098 = vst [vmem:[%s235 + $0x10] sm:$0xff] %v1091
        %s1099 = sand.u32 %s114, 1
        %s1100 = scalar_lea.sflag [#allocation4], %s1099
        %s1101 = sand.u32 %s114, 1
        %s1102 = smul.addr %s1101, 24
        %s1103 = scalar_lea.vmem [#allocation8], %s1102
        // Predicated region
        $region45: #{tpu_custom_call.1} parent=31 // pred_check
          %p1104 = pneg %p124
        $region46: #{tpu_custom_call.1} parent=31 // pred_check_branch
          %1106 = sbr.rel (%p1104) target = $region48
        $region47: #{tpu_custom_call.1} parent=31 // pred_region
          %s1107 = smul.u32 3, %s23
          %s1109 = ssub.s32 384, 384
          %1110 = vsyncadd %s1100, %s1109
          %s1111 = smul.addr %s1107, 2
          %s1112 = sadd.s32 %s24, %s1111
          %s1113 = smul.addr %s1112, 128
          %s1114 = scalar_lea.hbm %s3, %s1113
          %s1115 = sshll.u32 %s1103, 4
          %s1116 = int_to_ptr.vmem [resolvable:$true] %s1115
          %1121 = dma.vmem_to_hbm [thread:$0]  %s1116, 384, %s1114, %s1100, 128, 256, 8
        $region48: #{tpu_custom_call.1} parent=31 // pred_fallthru
          _
      $region32: #{tpu_custom_call.1} parent=5 // pred_fallthru
        _
      %p1122 = scmp.le.s32.totalorder 2, %s14
      // Predicated region
      $region49: #{tpu_custom_call.1} parent=5 // pred_check
        %p1123 = pneg %p1122
      $region50: #{tpu_custom_call.1} parent=5 // pred_check_branch
        %1125 = sbr.rel (%p1123) target = $region52
      $region51: #{tpu_custom_call.1} parent=5 // pred_region
        %s1126 = ssub.s32 %s14, 2
        // Predicated region
        $region53: #{tpu_custom_call.1} parent=51 // pred_check
          %p1127 = pneg %p130
        $region54: #{tpu_custom_call.1} parent=51 // pred_check_branch
          %1129 = sbr.rel (%p1127) target = $region56
        $region55: #{tpu_custom_call.1} parent=51 // pred_region
          %s1130 = sand.u32 %s115, 1
          %s1131 = scalar_lea.sflag [#allocation4], %s1130
          %s1132 = sand.u32 %s115, 1
          %s1133 = smul.addr %s1132, 24
          %s1134 = scalar_lea.vmem [#allocation8], %s1133
          %1135 = dma.done %s1131, 384
        $region56: #{tpu_custom_call.1} parent=51 // pred_fallthru
          _
      $region52: #{tpu_custom_call.1} parent=5 // pred_fallthru
        _
    $region6: #{tpu_custom_call.1} parent=1 // loop_footer
      %s18 = sadd.s32 1, %s14
    $region7: #{tpu_custom_call.1} parent=1 // loop_footer_branch
      %13 = sbr.rel target = $region3
    $region8: #{tpu_custom_call.1} parent=1 // loop_exit
      _
    %1136 = vsyncpa [#allocation3], 1
    %s1137 = scalar_lea.sflag [#allocation3], 1
    %1138 = vsyncpa %s1137, 1
    %1139 = vsyncpa [#allocation6], 1
    %1140 = vsyncpa [#allocation4], 1
    %s1141 = scalar_lea.sflag [#allocation4], 1
    %1142 = vsyncpa %s1141, 1

</llo_original>
